<compile_context>
chip_gen: v6e
topology: v6e:2x2x1
jax: 0.10.0
libtpu: 0.0.40
codegen_flags: <defaults>
</compile_context>

<pallas_src>
import functools

import jax
import jax.numpy as jnp
from jax.experimental import pallas as pl
from jax.experimental.pallas import tpu as pltpu

_LANE = 128          # TPU lane width (fast axis of a vreg)
_SUBLANE = 8         # TPU sublane count (slow axis of a vreg)


def identity_kernel(x_ref, o_ref):
    # Pure copy of the current [tm, 128] tile: VMEM load -> VMEM store.
    # HBM<->VMEM movement is handled by the BlockSpec software pipeline.
    o_ref[...] = x_ref[...]


@functools.partial(jax.jit, static_argnames=("block_rows",))
def identity_forward(x, *, block_rows=1024):
    """Identity: returns an array equal to `x` (same shape, same dtype)."""
    orig_shape = x.shape
    orig_dtype = x.dtype
    total = int(x.size)

    if total == 0:
        return x  # nothing to copy

    # ---- lane-dense 2-D layout: [rows_padded, 128] -----------------------
    rows = pl.cdiv(total, _LANE)                       # static Python int math
    tm = max(_SUBLANE, min(block_rows, rows))
    tm = pl.cdiv(tm, _SUBLANE) * _SUBLANE              # multiple of 8 sublanes
    rows_padded = pl.cdiv(rows, tm) * tm               # whole number of tiles
    padded_total = rows_padded * _LANE

    xf = x.reshape(-1)
    if padded_total != total:
        xf = jnp.pad(xf, (0, padded_total - total))
    x2d = xf.reshape(rows_padded, _LANE)

    # ---- VMEM budget / cost hint (memory-bound: bytes in + bytes out) ----
    itemsize = jnp.dtype(orig_dtype).itemsize
    tile_bytes = tm * _LANE * itemsize
    # in tile + out tile, each double-buffered, plus 2x headroom
    vmem_limit = max(4 * 1024 * 1024, 8 * tile_bytes)
    vmem_limit = min(vmem_limit, 48 * 1024 * 1024)     # stay under v7x 64 MiB

    cost = pl.CostEstimate(
        flops=0,
        transcendentals=0,
        bytes_accessed=2 * padded_total * itemsize,    # read + write
    )

    out2d = pl.pallas_call(
        identity_kernel,
        out_shape=jax.ShapeDtypeStruct((rows_padded, _LANE), orig_dtype),
        grid_spec=pltpu.PrefetchScalarGridSpec(
            num_scalar_prefetch=0,
            grid=(rows_padded // tm,),
            in_specs=[pl.BlockSpec((tm, _LANE), lambda i: (i, 0))],
            out_specs=pl.BlockSpec((tm, _LANE), lambda i: (i, 0)),
        ),
        compiler_params=pltpu.CompilerParams(
            dimension_semantics=("parallel",),
            vmem_limit_bytes=vmem_limit,
        ),
        cost_estimate=cost,
    )(x2d)

    out = out2d.reshape(-1)
    if padded_total != total:
        out = out[:total]
    return out.reshape(orig_shape)


if __name__ == "__main__":
    # Small deterministic example consistent with typical Swin feature maps.
    key = jax.random.PRNGKey(0)
    x = jax.random.normal(key, (2, 4, 16, 16), dtype=jnp.float32)

    out = jax.block_until_ready(identity_forward(x))
    assert out.shape == x.shape
    assert out.dtype == x.dtype
    assert jnp.array_equal(out, x), "Identity kernel output != input"

    # Ragged shape (size not a multiple of 128): exercises the padding path.
    x2 = jax.random.normal(jax.random.PRNGKey(1), (3, 7, 5), dtype=jnp.float32)
    out2 = jax.block_until_ready(identity_forward(x2))
    assert out2.shape == x2.shape and out2.dtype == x2.dtype
    assert jnp.array_equal(out2, x2), "Identity kernel output != input (ragged)"

    # Sub-32-bit dtype (bf16) sanity check.
    x3 = jax.random.normal(jax.random.PRNGKey(2), (2, 8, 32), dtype=jnp.bfloat16)
    out3 = jax.block_until_ready(identity_forward(x3))
    assert out3.shape == x3.shape and out3.dtype == x3.dtype
    assert jnp.array_equal(out3, x3), "Identity kernel output != input (bf16)"

    print("KERNEL_OK")
</pallas_src>

<mosaic_0001>
module attributes {stable_mosaic.version = 11 : i64} {
  func.func @identity_kernel(%arg0: i32, %arg1: memref<16x128xf32, #tpu.memory_space<vmem>>, %arg2: memref<16x128xf32, #tpu.memory_space<vmem>>) attributes {dimension_semantics = [#tpu.dimension_semantics<parallel>], iteration_bounds = array<i64: 1>, scalar_prefetch = 0 : i64, scratch_operands = 0 : i64, tpu.core_type = #tpu.core_type<tc>, window_params = [{transform_indices = @transform_0, window_bounds = array<i64: 16, 128>}, {transform_indices = @transform_1, window_bounds = array<i64: 16, 128>}]} {
    %c0 = arith.constant 0 : index
    %c0_0 = arith.constant 0 : index
    %0 = vector.load %arg1[%c0, %c0_0] : memref<16x128xf32, #tpu.memory_space<vmem>>, vector<16x128xf32>
    %c0_1 = arith.constant 0 : index
    %c0_2 = arith.constant 0 : index
    %1 = vector.load %arg2[%c0_1, %c0_2] : memref<16x128xf32, #tpu.memory_space<vmem>>, vector<16x128xf32>
    tpu.vector_store %arg2[%c0_1, %c0_2], %0 {strides = array<i32>} : memref<16x128xf32, #tpu.memory_space<vmem>>, vector<16x128xf32>,
    return
  }
  func.func @transform_0(%arg0: i32) -> (i32, i32) {
    %c0_i32 = arith.constant 0 : i32
    %c0_i32_0 = arith.constant 0 : i32
    return %arg0, %c0_i32 : i32, i32
  }
  func.func @transform_1(%arg0: i32) -> (i32, i32) {
    %c0_i32 = arith.constant 0 : i32
    %c0_i32_0 = arith.constant 0 : i32
    return %arg0, %c0_i32 : i32, i32
  }
}

</mosaic_0001>

<llo_original>
// kernel: identity_forward.1
$region0: #{identity_forward.1}
  #allocation0 [shape = 'u32[]', space=smem, size = 0x4, offset = 0x4, fixed_abs, tag = 'smem constant byte address 0x4 - core index']
  #allocation1 [shape = 'u32[144,128]{1,0:T(1,128)}', space=vmem, size = 0x12000, scoped, tag = 'internal scratch']
  %s0 = inlined_call_operand.vmem [shape: f32[16,128], index: 0, kind: input, shape index: {}]
  %s1 = inlined_call_operand.vmem [shape: f32[16,128], index: 1, kind: output, shape index: {}]
  %s2 = sld [smem:[#allocation0]]
  $region14: #{identity_forward.1} parent=0
    _
  %s4 = ssub.s32 1, %s2
  %s5 = scalar_select 0, %s4, %s2
  // Predicated region
  $region2: #{identity_forward.1} parent=0 // pred_check
    _
  $region3: #{identity_forward.1} parent=0 // pred_check_branch
    %7 = sbr.rel (0) target = $region5
  $region4: #{identity_forward.1} parent=0 // pred_region
    _
  $region5: #{identity_forward.1} parent=0 // pred_fallthru
    _
  %v8 = vld [vmem:[%s0] sm:$0xff]
  %v9 = vld [vmem:[%s0 + $0x8] sm:$0xff]
  %10 = vst [vmem:[%s1] sm:$0xff] %v8
  %11 = vst [vmem:[%s1 + $0x8] sm:$0xff] %v9
  // Predicated region
  $region6: #{identity_forward.1} parent=0 // pred_check
    _
  $region7: #{identity_forward.1} parent=0 // pred_check_branch
    %13 = sbr.rel (0) target = $region9
  $region8: #{identity_forward.1} parent=0 // pred_region
    _
  $region9: #{identity_forward.1} parent=0 // pred_fallthru
    _
  // Predicated region
  $region10: #{identity_forward.1} parent=0 // pred_check
    _
  $region11: #{identity_forward.1} parent=0 // pred_check_branch
    %15 = sbr.rel (0) target = $region13
  $region12: #{identity_forward.1} parent=0 // pred_region
    _
  $region13: #{identity_forward.1} parent=0 // pred_fallthru
    _

</llo_original>
